<compile_context>
chip_gen: v7x
topology: tpu7x:2x2x1
jax: 0.10.0
libtpu: 0.0.40
codegen_flags: <defaults>
</compile_context>

<pallas_src>
import jax
import jax.numpy as jnp
from jax.experimental import pallas as pl
from jax.experimental.pallas import tpu as pltpu


def _concat_dma_kernel(x_hbm, y_hbm, o_hbm, sem):
    """Two direct HBM->HBM DMAs into disjoint column slices of the output.

    x_hbm: (N, Cx*H*W)  y_hbm: (N, Cy*H*W)  o_hbm: (N, (Cx+Cy)*H*W)
    """
    cxf = x_hbm.shape[1]
    cyf = y_hbm.shape[1]
    cp_x = pltpu.make_async_copy(x_hbm, o_hbm.at[:, pl.ds(0, cxf)], sem.at[0])
    cp_y = pltpu.make_async_copy(y_hbm, o_hbm.at[:, pl.ds(cxf, cyf)], sem.at[1])
    # Issue both DMAs so they overlap on the DMA engines, then wait.
    cp_x.start()
    cp_y.start()
    cp_x.wait()
    cp_y.wait()


def augment_forward(x: jax.Array, y: jax.Array) -> jax.Array:
    """Equivalent of Augment.forward: torch.cat([x, y], dim=1) on NCHW."""
    assert x.ndim == 4 and y.ndim == 4, "expected NCHW tensors"
    n, cx, h, w = x.shape
    ny, cy, hy, wy = y.shape
    assert (n, h, w) == (ny, hy, wy), "non-channel dims must match"
    assert x.dtype == y.dtype

    cxf = cx * h * w
    cyf = cy * h * w

    # Flatten per-batch channel slabs (free row-major reshape): each batch row
    # becomes one contiguous run, so each DMA is a simple 2-D strided copy.
    x2 = x.reshape(n, cxf)
    y2 = y.reshape(n, cyf)

    itemsize = jnp.dtype(x.dtype).itemsize
    bytes_moved = 2 * (x.size + y.size) * itemsize  # read + write of every element

    out_flat = pl.pallas_call(
        _concat_dma_kernel,
        out_shape=jax.ShapeDtypeStruct((n, cxf + cyf), x.dtype),
        in_specs=[
            pl.BlockSpec(memory_space=pl.ANY),  # x stays in HBM
            pl.BlockSpec(memory_space=pl.ANY),  # y stays in HBM
        ],
        out_specs=pl.BlockSpec(memory_space=pl.ANY),  # out written via DMA
        scratch_shapes=[pltpu.SemaphoreType.DMA((2,))],
        cost_estimate=pl.CostEstimate(
            flops=0, transcendentals=0, bytes_accessed=bytes_moved
        ),
    )(x2, y2)

    return out_flat.reshape(n, cx + cy, h, w)


if __name__ == "__main__":
    key = jax.random.PRNGKey(0)
    kx, ky = jax.random.split(key)

    # Small NCHW shapes: batch=2, Cx=4, Cy=3, spatial=16.
    x = jax.random.normal(kx, (2, 4, 16, 16), dtype=jnp.float32)
    y = jax.random.normal(ky, (2, 3, 16, 16), dtype=jnp.float32)

    out = augment_forward(x, y)
    out = jax.block_until_ready(out)

    # Correctness check against plain JAX concatenation (same semantics as
    # torch.cat([x, y], dim=1)).
    ref = jnp.concatenate([x, y], axis=1)
    assert out.shape == (2, 7, 16, 16)
    assert out.dtype == x.dtype
    assert jnp.array_equal(out, ref)

    print("KERNEL_OK")
</pallas_src>

<mosaic_0001>
module attributes {stable_mosaic.version = 11 : i64} {
  func.func @_concat_dma_kernel(%arg0: memref<2x1024xf32, #tpu.memory_space<any>>, %arg1: memref<2x768xf32, #tpu.memory_space<any>>, %arg2: memref<2x1792xf32, #tpu.memory_space<any>>, %arg3: memref<2x!tpu.dma_semaphore, #tpu.memory_space<semaphore_mem>>) attributes {dimension_semantics = [], scalar_prefetch = 0 : i64, scratch_operands = 1 : i64, tpu.core_type = #tpu.core_type<tc>} {
    %c0_i32 = arith.constant 0 : i32
    %c0_i32_0 = arith.constant 0 : i32
    %c0_i32_1 = arith.constant 0 : i32
    %0 = tpu.memref_slice %arg2[%c0_i32_0, %c0_i32_1] : memref<2x1792xf32, #tpu.memory_space<any>> -> memref<2x1024xf32, #tpu.memory_space<any>>
    %1 = tpu.memref_slice %arg3[%c0_i32] : memref<2x!tpu.dma_semaphore, #tpu.memory_space<semaphore_mem>> -> memref<1x!tpu.dma_semaphore, #tpu.memory_space<semaphore_mem>>
    %2 = tpu.memref_squeeze %1 : memref<1x!tpu.dma_semaphore, #tpu.memory_space<semaphore_mem>> -> memref<!tpu.dma_semaphore, #tpu.memory_space<semaphore_mem>>
    tpu.enqueue_dma source(%arg0 : memref<2x1024xf32, #tpu.memory_space<any>>) target(%0 : memref<2x1024xf32, #tpu.memory_space<any>>) target_semaphore(%2 : memref<!tpu.dma_semaphore, #tpu.memory_space<semaphore_mem>>)
    %c1_i32 = arith.constant 1 : i32
    %c0_i32_2 = arith.constant 0 : i32
    %c1024_i32 = arith.constant 1024 : i32
    %3 = tpu.memref_slice %arg2[%c0_i32_2, %c1024_i32] : memref<2x1792xf32, #tpu.memory_space<any>> -> memref<2x768xf32, #tpu.memory_space<any>>
    %4 = tpu.memref_slice %arg3[%c1_i32] : memref<2x!tpu.dma_semaphore, #tpu.memory_space<semaphore_mem>> -> memref<1x!tpu.dma_semaphore, #tpu.memory_space<semaphore_mem>>
    %5 = tpu.memref_squeeze %4 : memref<1x!tpu.dma_semaphore, #tpu.memory_space<semaphore_mem>> -> memref<!tpu.dma_semaphore, #tpu.memory_space<semaphore_mem>>
    tpu.enqueue_dma source(%arg1 : memref<2x768xf32, #tpu.memory_space<any>>) target(%3 : memref<2x768xf32, #tpu.memory_space<any>>) target_semaphore(%5 : memref<!tpu.dma_semaphore, #tpu.memory_space<semaphore_mem>>)
    %c0_i32_3 = arith.constant 0 : i32
    %c0_i32_4 = arith.constant 0 : i32
    %c0_i32_5 = arith.constant 0 : i32
    %6 = tpu.memref_slice %arg2[%c0_i32_4, %c0_i32_5] : memref<2x1792xf32, #tpu.memory_space<any>> -> memref<2x1024xf32, #tpu.memory_space<any>>
    %7 = tpu.memref_slice %arg3[%c0_i32_3] : memref<2x!tpu.dma_semaphore, #tpu.memory_space<semaphore_mem>> -> memref<1x!tpu.dma_semaphore, #tpu.memory_space<semaphore_mem>>
    %8 = tpu.memref_squeeze %7 : memref<1x!tpu.dma_semaphore, #tpu.memory_space<semaphore_mem>> -> memref<!tpu.dma_semaphore, #tpu.memory_space<semaphore_mem>>
    tpu.wait_dma2 semaphore(%8 : memref<!tpu.dma_semaphore, #tpu.memory_space<semaphore_mem>>) src(%arg0 : memref<2x1024xf32, #tpu.memory_space<any>>) dst(%6 : memref<2x1024xf32, #tpu.memory_space<any>>)
    %c1_i32_6 = arith.constant 1 : i32
    %c0_i32_7 = arith.constant 0 : i32
    %c1024_i32_8 = arith.constant 1024 : i32
    %9 = tpu.memref_slice %arg2[%c0_i32_7, %c1024_i32_8] : memref<2x1792xf32, #tpu.memory_space<any>> -> memref<2x768xf32, #tpu.memory_space<any>>
    %10 = tpu.memref_slice %arg3[%c1_i32_6] : memref<2x!tpu.dma_semaphore, #tpu.memory_space<semaphore_mem>> -> memref<1x!tpu.dma_semaphore, #tpu.memory_space<semaphore_mem>>
    %11 = tpu.memref_squeeze %10 : memref<1x!tpu.dma_semaphore, #tpu.memory_space<semaphore_mem>> -> memref<!tpu.dma_semaphore, #tpu.memory_space<semaphore_mem>>
    tpu.wait_dma2 semaphore(%11 : memref<!tpu.dma_semaphore, #tpu.memory_space<semaphore_mem>>) src(%arg1 : memref<2x768xf32, #tpu.memory_space<any>>) dst(%9 : memref<2x768xf32, #tpu.memory_space<any>>)
    return
  }
}

</mosaic_0001>

<llo_original>
// kernel: tpu_custom_call.1
$region0: #{tpu_custom_call.1}
  #allocation0 [shape = 'u32[]', space=smem, size = 0x4, offset = 0x4, fixed_abs, tag = 'smem constant byte address 0x4 - core index']
  #allocation1 [shape = 'u32[144,128]{1,0:T(1,128)}', space=vmem, size = 0x12000, scoped, tag = 'internal scratch']
  #allocation2 [shape = 's32[2]{0}', space=sflag, size = 0x8, scoped, tag = 'scratch operand']
  #allocation3 [shape = 's32[]', space=sflag, size = 0x4, offset = 0, fixed_abs, tag = 'sflag constant byte address 0x0 - dummy sync flag']
  #allocation4 [shape = 'u32[0]{0}', space=smem, size = 0, offset = 0, fixed_abs, tag = 'smem constant byte address 0x0 - null']
  #allocation5 [shape = 's32[]', space=sflag, size = 0x4, offset = 0, fixed_abs, tag = 'sflag constant byte address 0x0 - dummy sync flag']
  #allocation6 [shape = 'u32[0]{0}', space=smem, size = 0, offset = 0, fixed_abs, tag = 'smem constant byte address 0x0 - null']
  %s0 = inlined_call_operand.hbm [shape: f32[2,1024], index: 0, kind: input, shape index: {}]
  %s1 = inlined_call_operand.hbm [shape: f32[2,768], index: 1, kind: input, shape index: {}]
  %s2 = inlined_call_operand.hbm [shape: f32[2,1792], index: 2, kind: output, shape index: {}]
  %s3 = sld [smem:[#allocation0]]
  $region2: #{tpu_custom_call.1} parent=0
    _
  %s5 = ssub.s32 1, %s3
  %s6 = scalar_select 0, %s5, %s3
  %s8 = sshll.u32 1, 14
  %s9 = sxor.u32 4294967295, %s8
  %s12 = sshll.u32 3, 24
  %s13 = sxor.u32 4294967295, %s12
  %s14 = sand.u32 0, %s13
  %s16 = sor.u32 %s14, 0
  %19 = dma.general %s0, 256, %s2, [#allocation2], [#allocation3], [#allocation4], %s16, 0
  %s20 = scalar_lea.hbm %s2, 256
  %s21 = scalar_lea.sflag [#allocation2], 1
  %s23 = sshll.u32 1, 14
  %s24 = sxor.u32 4294967295, %s23
  %s27 = sshll.u32 3, 24
  %s28 = sxor.u32 4294967295, %s27
  %s29 = sand.u32 0, %s28
  %s31 = sor.u32 %s29, 0
  %34 = dma.general %s1, 192, %s20, %s21, [#allocation5], [#allocation6], %s31, 0
  %s35 = smul.u32 2, 1
  %s36 = smul.u32 %s35, 8
  %s37 = sshll.u32 %s36, 4
  %38 = dma.done [#allocation2], %s37
  %s39 = smul.u32 %s35, 6
  %s40 = sshll.u32 %s39, 4
  %41 = dma.done %s21, %s40
  %42 = vsyncmov [#allocation2]
  %s43 = vpop.sfrf %42
  %p44 = scmp.eq.s32.totalorder %s43, 0
  %p45 = pneg %p44
  %47 = shalt.err (%p45)
  %s48 = scalar_lea.sflag [#allocation2], 1
  %49 = vsyncmov %s48
  %s50 = vpop.sfrf %49
  %p51 = scmp.eq.s32.totalorder %s50, 0
  %p52 = pneg %p51
  %54 = shalt.err (%p52)

</llo_original>
